<compile_context>
chip_gen: v6e
topology: v6e:2x2x1
jax: 0.10.0
libtpu: 0.0.40
codegen_flags: <defaults>
</compile_context>

<pallas_src>
import math

import jax
import jax.numpy as jnp
import numpy as np
from jax.experimental import pallas as pl
from jax.experimental.pallas import tpu as pltpu  # noqa: F401  (kept for TPU-specific tuning hooks)


def _layer_norm(z, gamma, beta, eps=1e-5):
    mu = jnp.mean(z, axis=-1, keepdims=True)
    var = jnp.mean(jnp.square(z - mu), axis=-1, keepdims=True)
    return (z - mu) * jax.lax.rsqrt(var + eps) * gamma + beta


def _make_kernel(B, T, D, inv_denom):
    """Build the single-invocation kernel; B/T/D/inv_denom are baked in as constants."""
    scale = 1.0 / math.sqrt(D)

    def kernel(x_ref,                      # (B*T, D)  [pe | src], all batches stacked
               wqkv_ref, bqkv_ref,         # (D, 3D), (1, 3D)   fused Q|K|V projection
               wo_ref, bo_ref,             # (D, D), (1, D)
               g1_ref, be1_ref,            # LayerNorm 1
               w1_ref, b1_ref, w2_ref, b2_ref,   # feed-forward
               g2_ref, be2_ref,            # LayerNorm 2
               wh1_ref, bh1_ref, wh2_ref, bh2_ref,  # classifier head
               out_ref):                   # (B, C)
        x = x_ref[...]                                                     # (B*T, D)

        # ---- fused Q/K/V projection: one MXU pass instead of three ----
        qkv = jnp.dot(x, wqkv_ref[...], preferred_element_type=jnp.float32) + bqkv_ref[...]
        q = qkv[:, :D].reshape(B, T, D)
        k = qkv[:, D:2 * D].reshape(B, T, D)
        v = qkv[:, 2 * D:].reshape(B, T, D)

        # ---- single-head self-attention over all batches at once ----
        scores = jnp.einsum("btd,bsd->bts", q, k,
                            preferred_element_type=jnp.float32) * scale
        scores = scores - jnp.max(scores, axis=-1, keepdims=True)
        p = jnp.exp(scores)
        attn = p * pl.reciprocal(jnp.sum(p, axis=-1, keepdims=True), approx=True)
        ctx = jnp.einsum("bts,bsd->btd", attn, v,
                         preferred_element_type=jnp.float32)               # (B, T, D)
        attn_out = (jnp.dot(ctx.reshape(B * T, D), wo_ref[...],
                            preferred_element_type=jnp.float32) + bo_ref[...])

        # ---- residual + LayerNorm 1 ----
        h = _layer_norm(x + attn_out, g1_ref[...], be1_ref[...])

        # ---- feed-forward (ReLU) + residual + LayerNorm 2 ----
        ff = jnp.maximum(
            jnp.dot(h, w1_ref[...], preferred_element_type=jnp.float32) + b1_ref[...], 0.0)
        ff = jnp.dot(ff, w2_ref[...], preferred_element_type=jnp.float32) + b2_ref[...]
        h2 = _layer_norm(h + ff, g2_ref[...], be2_ref[...])

        # ---- mean aggregation: sum over time * 1/(lengths+1) == * 1/T ----
        pooled = jnp.sum(h2.reshape(B, T, D), axis=1) * inv_denom          # (B, D)

        # ---- classifier head: Linear -> ReLU -> Linear ----
        hid = jnp.maximum(
            jnp.dot(pooled, wh1_ref[...], preferred_element_type=jnp.float32) + bh1_ref[...],
            0.0)
        out_ref[...] = (jnp.dot(hid, wh2_ref[...],
                                preferred_element_type=jnp.float32) + bh2_ref[...])

    return kernel


def transformer_classifier_forward(src, params, *, max_len=500, d_pe=16):
    """src: (B, T, d_inp) float32. Returns logits (B, n_classes)."""
    B, T, d_inp = src.shape
    D = d_pe + d_inp
    C = params["bh2"].shape[-1]

    # Positional encoding depends only on (T, d_pe, max_len): build it at trace
    # time with numpy (constant), instead of tile/transpose/sin/cos XLA ops.
    num_ts = d_pe // 2
    times = np.linspace(0.0, 1.0, T)                                   # default-timesteps path
    timescales = float(max_len) ** np.linspace(0.0, 1.0, num_ts)
    scaled = times[:, None] / timescales[None, :]
    pe = np.concatenate([np.sin(scaled), np.cos(scaled)], axis=-1).astype(np.float32)  # (T, d_pe)
    pe_bt = jnp.asarray(np.tile(pe, (B, 1)))                           # (B*T, d_pe)

    # lengths = sum(linspace(0,1,T) > 0) = T-1  ->  denom = lengths + 1 = T.
    # TODO(synk): this constant denominator is only valid for the default
    # timesteps = linspace(0,1,T) forward path (no padded/zero times, no src_mask).
    inv_denom = 1.0 / float(T)

    # One cheap wrapper op: concat the constant PE with the (free) reshape of src.
    x2d = jnp.concatenate(
        [pe_bt, src.reshape(B * T, d_inp).astype(jnp.float32)], axis=-1)  # (B*T, D)

    # Fuse Q/K/V weights into one (D, 3D) projection.
    wqkv = jnp.concatenate([params["wq"], params["wk"], params["wv"]], axis=1)
    bqkv = jnp.concatenate([params["bq"], params["bk"], params["bv"]], axis=1)

    weights = [wqkv, bqkv, params["wo"], params["bo"],
               params["g1"], params["be1"],
               params["w1"], params["b1"], params["w2"], params["b2"],
               params["g2"], params["be2"],
               params["wh1"], params["bh1"], params["wh2"], params["bh2"]]

    kernel = _make_kernel(B, T, D, inv_denom)
    # Single invocation (no grid): every array is a whole-array VMEM block, all
    # weights are loaded exactly once, and the (B, C) logits are written in one store.
    return pl.pallas_call(
        kernel,
        out_shape=jax.ShapeDtypeStruct((B, C), jnp.float32),
    )(x2d, *weights)


def reference_forward(src, params, *, max_len=500, d_pe=16):
    """Pure-JAX mirror of the PyTorch forward (eval mode) for verification."""
    B, T, d_inp = src.shape
    D = d_pe + d_inp
    timesteps = jnp.tile(jnp.linspace(0.0, 1.0, T, dtype=jnp.float32)[None, :], (B, 1))
    times = timesteps.T                                                  # (T, B)
    lengths = jnp.sum(times > 0, axis=0)                                 # (B,)
    num_ts = d_pe // 2
    timescales = jnp.float32(max_len) ** jnp.linspace(0.0, 1.0, num_ts, dtype=jnp.float32)
    scaled = times[:, :, None] / timescales[None, None, :]               # (T, B, num_ts)
    pe = jnp.concatenate([jnp.sin(scaled), jnp.cos(scaled)], axis=-1)    # (T, B, d_pe)
    x = jnp.concatenate([pe, jnp.transpose(src, (1, 0, 2))], axis=2)     # (T, B, D)
    x = jnp.transpose(x, (1, 0, 2)).astype(jnp.float32)                  # (B, T, D)

    p = params
    q = x @ p["wq"] + p["bq"]
    k = x @ p["wk"] + p["bk"]
    v = x @ p["wv"] + p["bv"]
    scores = jnp.einsum("btd,bsd->bts", q, k) / math.sqrt(D)
    attn = jax.nn.softmax(scores, axis=-1)
    ctx = jnp.einsum("bts,bsd->btd", attn, v)
    attn_out = ctx @ p["wo"] + p["bo"]
    h = _layer_norm(x + attn_out, p["g1"], p["be1"])
    ff = jnp.maximum(h @ p["w1"] + p["b1"], 0.0) @ p["w2"] + p["b2"]
    h2 = _layer_norm(h + ff, p["g2"], p["be2"])
    denom = (lengths + 1).astype(jnp.float32)
    pooled = jnp.sum(h2, axis=1) / denom[:, None]
    hid = jnp.maximum(pooled @ p["wh1"] + p["bh1"], 0.0)
    return hid @ p["wh2"] + p["bh2"]


def init_params(key, d_inp, d_pe, ffn, n_classes):
    """Deterministic synthetic parameters (shapes follow the PyTorch module)."""
    D = d_pe + d_inp
    ks = iter(jax.random.split(key, 24))

    def w(shape, fan_in):
        return jax.random.normal(next(ks), shape, jnp.float32) / np.sqrt(fan_in)

    def bias(shape):
        return 0.01 * jax.random.normal(next(ks), shape, jnp.float32)

    return {
        # self-attention in/out projections (stored pre-transposed: x @ W)
        "wq": w((D, D), D), "bq": bias((1, D)),
        "wk": w((D, D), D), "bk": bias((1, D)),
        "wv": w((D, D), D), "bv": bias((1, D)),
        "wo": w((D, D), D), "bo": bias((1, D)),
        # LayerNorm 1 / 2
        "g1": jnp.ones((1, D), jnp.float32), "be1": jnp.zeros((1, D), jnp.float32),
        # feed-forward
        "w1": w((D, ffn), D), "b1": bias((1, ffn)),
        "w2": w((ffn, D), ffn), "b2": bias((1, D)),
        "g2": jnp.ones((1, D), jnp.float32), "be2": jnp.zeros((1, D), jnp.float32),
        # classifier head (Linear -> ReLU -> Linear)
        "wh1": w((D, D), D), "bh1": bias((1, D)),
        "wh2": w((D, n_classes), D), "bh2": bias((1, n_classes)),
    }
    # TODO(synk): MLP_encoder / dropout layers exist in __init__ but are unused/identity
    # in this forward path (eval mode), so they are intentionally omitted.


if __name__ == "__main__":
    B, T, d_inp, d_pe, n_classes, ffn, max_len = 2, 8, 4, 16, 2, 72, 500

    key = jax.random.PRNGKey(0)
    k_src, k_par = jax.random.split(key)
    src = jax.random.normal(k_src, (B, T, d_inp), jnp.float32)   # forward input (B, T, d_inp)
    params = init_params(k_par, d_inp, d_pe, ffn, n_classes)

    out = transformer_classifier_forward(src, params, max_len=max_len, d_pe=d_pe)
    out = jax.block_until_ready(out)

    ref = reference_forward(src, params, max_len=max_len, d_pe=d_pe)
    # slightly relaxed vs 1e-4 because the softmax denominator uses
    # pl.reciprocal(approx=True) (EUP approximate reciprocal).
    np.testing.assert_allclose(np.asarray(out), np.asarray(ref), rtol=1e-3, atol=1e-3)

    print("KERNEL_OK")
</pallas_src>

<mosaic_0001>
module attributes {stable_mosaic.version = 11 : i64} {
  func.func @kernel(%arg0: memref<16x20xf32, #tpu.memory_space<vmem>>, %arg1: memref<20x60xf32, #tpu.memory_space<vmem>>, %arg2: memref<1x60xf32, #tpu.memory_space<vmem>>, %arg3: memref<20x20xf32, #tpu.memory_space<vmem>>, %arg4: memref<1x20xf32, #tpu.memory_space<vmem>>, %arg5: memref<1x20xf32, #tpu.memory_space<vmem>>, %arg6: memref<1x20xf32, #tpu.memory_space<vmem>>, %arg7: memref<20x72xf32, #tpu.memory_space<vmem>>, %arg8: memref<1x72xf32, #tpu.memory_space<vmem>>, %arg9: memref<72x20xf32, #tpu.memory_space<vmem>>, %arg10: memref<1x20xf32, #tpu.memory_space<vmem>>, %arg11: memref<1x20xf32, #tpu.memory_space<vmem>>, %arg12: memref<1x20xf32, #tpu.memory_space<vmem>>, %arg13: memref<20x20xf32, #tpu.memory_space<vmem>>, %arg14: memref<1x20xf32, #tpu.memory_space<vmem>>, %arg15: memref<20x2xf32, #tpu.memory_space<vmem>>, %arg16: memref<1x2xf32, #tpu.memory_space<vmem>>, %arg17: memref<2x2xf32, #tpu.memory_space<vmem>>) attributes {dimension_semantics = [], scalar_prefetch = 0 : i64, scratch_operands = 0 : i64, tpu.core_type = #tpu.core_type<tc>} {
    %c0 = arith.constant 0 : index
    %c0_0 = arith.constant 0 : index
    %0 = vector.load %arg0[%c0, %c0_0] : memref<16x20xf32, #tpu.memory_space<vmem>>, vector<16x20xf32>
    %c0_1 = arith.constant 0 : index
    %c0_2 = arith.constant 0 : index
    %1 = vector.load %arg1[%c0_1, %c0_2] : memref<20x60xf32, #tpu.memory_space<vmem>>, vector<20x60xf32>
    %cst = arith.constant dense<0.000000e+00> : vector<16x60xf32>
    %2 = tpu.matmul %0, %1, %cst {dimension_numbers = #tpu.dot_dimension_numbers<[1], [0], [0], [1], [0, 0, 1, 1], [], []>} : vector<16x20xf32>, vector<20x60xf32>, vector<16x60xf32> -> vector<16x60xf32>
    %c0_3 = arith.constant 0 : index
    %c0_4 = arith.constant 0 : index
    %3 = vector.load %arg2[%c0_3, %c0_4] : memref<1x60xf32, #tpu.memory_space<vmem>>, vector<1x60xf32>
    %4 = vector.broadcast %3 : vector<1x60xf32> to vector<16x60xf32>
    %5 = arith.addf %2, %4 : vector<16x60xf32>
    %6 = vector.extract_strided_slice %5 {offsets = [0, 0], sizes = [16, 20], strides = [1, 1]} : vector<16x60xf32> to vector<16x20xf32>
    %7 = vector.shape_cast %6 : vector<16x20xf32> to vector<2x8x20xf32>
    %8 = vector.extract_strided_slice %5 {offsets = [0, 20], sizes = [16, 20], strides = [1, 1]} : vector<16x60xf32> to vector<16x20xf32>
    %9 = vector.shape_cast %8 : vector<16x20xf32> to vector<2x8x20xf32>
    %10 = vector.extract_strided_slice %5 {offsets = [0, 40], sizes = [16, 20], strides = [1, 1]} : vector<16x60xf32> to vector<16x20xf32>
    %11 = vector.shape_cast %10 : vector<16x20xf32> to vector<2x8x20xf32>
    "tpu.trace_start"() <{level = 10 : i32, message = "btd,bsd->bts"}> : () -> ()
    %cst_5 = arith.constant dense<0.000000e+00> : vector<2x8x8xf32>
    %12 = tpu.matmul %7, %9, %cst_5 {dimension_numbers = #tpu.dot_dimension_numbers<[2], [2], [1], [1], [0, 0, 0, 1, 1, 1], [0], [0]>} : vector<2x8x20xf32>, vector<2x8x20xf32>, vector<2x8x8xf32> -> vector<2x8x8xf32>
    "tpu.trace_stop"() : () -> ()
    %cst_6 = arith.constant 0.223606795 : f32
    %13 = vector.broadcast %cst_6 : f32 to vector<2x8x8xf32>
    %14 = arith.mulf %12, %13 : vector<2x8x8xf32>
    %cst_7 = arith.constant dense<0xFF800000> : vector<2x8xf32>
    %15 = vector.multi_reduction <maximumf>, %14, %cst_7 [2] : vector<2x8x8xf32> to vector<2x8xf32>
    %16 = vector.shape_cast %15 : vector<2x8xf32> to vector<2x8x1xf32>
    %17 = vector.broadcast %16 : vector<2x8x1xf32> to vector<2x8x8xf32>
    %18 = arith.subf %14, %17 : vector<2x8x8xf32>
    %19 = math.exp %18 : vector<2x8x8xf32>
    %cst_8 = arith.constant dense<0.000000e+00> : vector<2x8xf32>
    %20 = vector.multi_reduction <add>, %19, %cst_8 [2] : vector<2x8x8xf32> to vector<2x8xf32>
    %21 = vector.shape_cast %20 : vector<2x8xf32> to vector<2x8x1xf32>
    %22 = tpu.reciprocal %21 {approx = true} : vector<2x8x1xf32> -> vector<2x8x1xf32>
    %23 = vector.broadcast %22 : vector<2x8x1xf32> to vector<2x8x8xf32>
    %24 = arith.mulf %19, %23 : vector<2x8x8xf32>
    "tpu.trace_start"() <{level = 10 : i32, message = "bts,bsd->btd"}> : () -> ()
    %cst_9 = arith.constant dense<0.000000e+00> : vector<2x8x20xf32>
    %25 = tpu.matmul %24, %11, %cst_9 {dimension_numbers = #tpu.dot_dimension_numbers<[2], [1], [1], [2], [0, 0, 0, 1, 1, 2], [0], [0]>} : vector<2x8x8xf32>, vector<2x8x20xf32>, vector<2x8x20xf32> -> vector<2x8x20xf32>
    "tpu.trace_stop"() : () -> ()
    %26 = vector.shape_cast %25 : vector<2x8x20xf32> to vector<16x20xf32>
    %c0_10 = arith.constant 0 : index
    %c0_11 = arith.constant 0 : index
    %27 = vector.load %arg3[%c0_10, %c0_11] : memref<20x20xf32, #tpu.memory_space<vmem>>, vector<20x20xf32>
    %cst_12 = arith.constant dense<0.000000e+00> : vector<16x20xf32>
    %28 = tpu.matmul %26, %27, %cst_12 {dimension_numbers = #tpu.dot_dimension_numbers<[1], [0], [0], [1], [0, 0, 1, 1], [], []>} : vector<16x20xf32>, vector<20x20xf32>, vector<16x20xf32> -> vector<16x20xf32>
    %c0_13 = arith.constant 0 : index
    %c0_14 = arith.constant 0 : index
    %29 = vector.load %arg4[%c0_13, %c0_14] : memref<1x20xf32, #tpu.memory_space<vmem>>, vector<1x20xf32>
    %30 = vector.broadcast %29 : vector<1x20xf32> to vector<16x20xf32>
    %31 = arith.addf %28, %30 : vector<16x20xf32>
    %32 = arith.addf %0, %31 : vector<16x20xf32>
    %c0_15 = arith.constant 0 : index
    %c0_16 = arith.constant 0 : index
    %33 = vector.load %arg5[%c0_15, %c0_16] : memref<1x20xf32, #tpu.memory_space<vmem>>, vector<1x20xf32>
    %c0_17 = arith.constant 0 : index
    %c0_18 = arith.constant 0 : index
    %34 = vector.load %arg6[%c0_17, %c0_18] : memref<1x20xf32, #tpu.memory_space<vmem>>, vector<1x20xf32>
    %cst_19 = arith.constant dense<0.000000e+00> : vector<16xf32>
    %35 = vector.multi_reduction <add>, %32, %cst_19 [1] : vector<16x20xf32> to vector<16xf32>
    %36 = vector.shape_cast %35 : vector<16xf32> to vector<16x1xf32>
    %cst_20 = arith.constant 2.000000e+01 : f32
    %37 = vector.broadcast %cst_20 : f32 to vector<16x1xf32>
    %38 = arith.divf %36, %37 : vector<16x1xf32>
    %39 = vector.broadcast %38 : vector<16x1xf32> to vector<16x20xf32>
    %40 = arith.subf %32, %39 : vector<16x20xf32>
    %41 = arith.mulf %40, %40 : vector<16x20xf32>
    %cst_21 = arith.constant dense<0.000000e+00> : vector<16xf32>
    %42 = vector.multi_reduction <add>, %41, %cst_21 [1] : vector<16x20xf32> to vector<16xf32>
    %43 = vector.shape_cast %42 : vector<16xf32> to vector<16x1xf32>
    %cst_22 = arith.constant 2.000000e+01 : f32
    %44 = vector.broadcast %cst_22 : f32 to vector<16x1xf32>
    %45 = arith.divf %43, %44 : vector<16x1xf32>
    %46 = vector.broadcast %38 : vector<16x1xf32> to vector<16x20xf32>
    %47 = arith.subf %32, %46 : vector<16x20xf32>
    %cst_23 = arith.constant 9.99999974E-6 : f32
    %48 = vector.broadcast %cst_23 : f32 to vector<16x1xf32>
    %49 = arith.addf %45, %48 : vector<16x1xf32>
    %50 = math.rsqrt %49 : vector<16x1xf32>
    %51 = vector.broadcast %50 : vector<16x1xf32> to vector<16x20xf32>
    %52 = arith.mulf %47, %51 : vector<16x20xf32>
    %53 = vector.broadcast %33 : vector<1x20xf32> to vector<16x20xf32>
    %54 = arith.mulf %52, %53 : vector<16x20xf32>
    %55 = vector.broadcast %34 : vector<1x20xf32> to vector<16x20xf32>
    %56 = arith.addf %54, %55 : vector<16x20xf32>
    %c0_24 = arith.constant 0 : index
    %c0_25 = arith.constant 0 : index
    %57 = vector.load %arg7[%c0_24, %c0_25] : memref<20x72xf32, #tpu.memory_space<vmem>>, vector<20x72xf32>
    %cst_26 = arith.constant dense<0.000000e+00> : vector<16x72xf32>
    %58 = tpu.matmul %56, %57, %cst_26 {dimension_numbers = #tpu.dot_dimension_numbers<[1], [0], [0], [1], [0, 0, 1, 1], [], []>} : vector<16x20xf32>, vector<20x72xf32>, vector<16x72xf32> -> vector<16x72xf32>
    %c0_27 = arith.constant 0 : index
    %c0_28 = arith.constant 0 : index
    %59 = vector.load %arg8[%c0_27, %c0_28] : memref<1x72xf32, #tpu.memory_space<vmem>>, vector<1x72xf32>
    %60 = vector.broadcast %59 : vector<1x72xf32> to vector<16x72xf32>
    %61 = arith.addf %58, %60 : vector<16x72xf32>
    %cst_29 = arith.constant 0.000000e+00 : f32
    %62 = vector.broadcast %cst_29 : f32 to vector<16x72xf32>
    %63 = arith.maximumf %61, %62 : vector<16x72xf32>
    %c0_30 = arith.constant 0 : index
    %c0_31 = arith.constant 0 : index
    %64 = vector.load %arg9[%c0_30, %c0_31] : memref<72x20xf32, #tpu.memory_space<vmem>>, vector<72x20xf32>
    %cst_32 = arith.constant dense<0.000000e+00> : vector<16x20xf32>
    %65 = tpu.matmul %63, %64, %cst_32 {dimension_numbers = #tpu.dot_dimension_numbers<[1], [0], [0], [1], [0, 0, 1, 1], [], []>} : vector<16x72xf32>, vector<72x20xf32>, vector<16x20xf32> -> vector<16x20xf32>
    %c0_33 = arith.constant 0 : index
    %c0_34 = arith.constant 0 : index
    %66 = vector.load %arg10[%c0_33, %c0_34] : memref<1x20xf32, #tpu.memory_space<vmem>>, vector<1x20xf32>
    %67 = vector.broadcast %66 : vector<1x20xf32> to vector<16x20xf32>
    %68 = arith.addf %65, %67 : vector<16x20xf32>
    %69 = arith.addf %56, %68 : vector<16x20xf32>
    %c0_35 = arith.constant 0 : index
    %c0_36 = arith.constant 0 : index
    %70 = vector.load %arg11[%c0_35, %c0_36] : memref<1x20xf32, #tpu.memory_space<vmem>>, vector<1x20xf32>
    %c0_37 = arith.constant 0 : index
    %c0_38 = arith.constant 0 : index
    %71 = vector.load %arg12[%c0_37, %c0_38] : memref<1x20xf32, #tpu.memory_space<vmem>>, vector<1x20xf32>
    %cst_39 = arith.constant dense<0.000000e+00> : vector<16xf32>
    %72 = vector.multi_reduction <add>, %69, %cst_39 [1] : vector<16x20xf32> to vector<16xf32>
    %73 = vector.shape_cast %72 : vector<16xf32> to vector<16x1xf32>
    %cst_40 = arith.constant 2.000000e+01 : f32
    %74 = vector.broadcast %cst_40 : f32 to vector<16x1xf32>
    %75 = arith.divf %73, %74 : vector<16x1xf32>
    %76 = vector.broadcast %75 : vector<16x1xf32> to vector<16x20xf32>
    %77 = arith.subf %69, %76 : vector<16x20xf32>
    %78 = arith.mulf %77, %77 : vector<16x20xf32>
    %cst_41 = arith.constant dense<0.000000e+00> : vector<16xf32>
    %79 = vector.multi_reduction <add>, %78, %cst_41 [1] : vector<16x20xf32> to vector<16xf32>
    %80 = vector.shape_cast %79 : vector<16xf32> to vector<16x1xf32>
    %cst_42 = arith.constant 2.000000e+01 : f32
    %81 = vector.broadcast %cst_42 : f32 to vector<16x1xf32>
    %82 = arith.divf %80, %81 : vector<16x1xf32>
    %83 = vector.broadcast %75 : vector<16x1xf32> to vector<16x20xf32>
    %84 = arith.subf %69, %83 : vector<16x20xf32>
    %cst_43 = arith.constant 9.99999974E-6 : f32
    %85 = vector.broadcast %cst_43 : f32 to vector<16x1xf32>
    %86 = arith.addf %82, %85 : vector<16x1xf32>
    %87 = math.rsqrt %86 : vector<16x1xf32>
    %88 = vector.broadcast %87 : vector<16x1xf32> to vector<16x20xf32>
    %89 = arith.mulf %84, %88 : vector<16x20xf32>
    %90 = vector.broadcast %70 : vector<1x20xf32> to vector<16x20xf32>
    %91 = arith.mulf %89, %90 : vector<16x20xf32>
    %92 = vector.broadcast %71 : vector<1x20xf32> to vector<16x20xf32>
    %93 = arith.addf %91, %92 : vector<16x20xf32>
    %94 = vector.shape_cast %93 : vector<16x20xf32> to vector<2x8x20xf32>
    %cst_44 = arith.constant dense<0.000000e+00> : vector<2x20xf32>
    %95 = vector.multi_reduction <add>, %94, %cst_44 [1] : vector<2x8x20xf32> to vector<2x20xf32>
    %cst_45 = arith.constant 1.250000e-01 : f32
    %96 = vector.broadcast %cst_45 : f32 to vector<2x20xf32>
    %97 = arith.mulf %95, %96 : vector<2x20xf32>
    %c0_46 = arith.constant 0 : index
    %c0_47 = arith.constant 0 : index
    %98 = vector.load %arg13[%c0_46, %c0_47] : memref<20x20xf32, #tpu.memory_space<vmem>>, vector<20x20xf32>
    %cst_48 = arith.constant dense<0.000000e+00> : vector<2x20xf32>
    %99 = tpu.matmul %97, %98, %cst_48 {dimension_numbers = #tpu.dot_dimension_numbers<[1], [0], [0], [1], [0, 0, 1, 1], [], []>} : vector<2x20xf32>, vector<20x20xf32>, vector<2x20xf32> -> vector<2x20xf32>
    %c0_49 = arith.constant 0 : index
    %c0_50 = arith.constant 0 : index
    %100 = vector.load %arg14[%c0_49, %c0_50] : memref<1x20xf32, #tpu.memory_space<vmem>>, vector<1x20xf32>
    %101 = vector.broadcast %100 : vector<1x20xf32> to vector<2x20xf32>
    %102 = arith.addf %99, %101 : vector<2x20xf32>
    %cst_51 = arith.constant 0.000000e+00 : f32
    %103 = vector.broadcast %cst_51 : f32 to vector<2x20xf32>
    %104 = arith.maximumf %102, %103 : vector<2x20xf32>
    %c0_52 = arith.constant 0 : index
    %c0_53 = arith.constant 0 : index
    %105 = vector.load %arg15[%c0_52, %c0_53] : memref<20x2xf32, #tpu.memory_space<vmem>>, vector<20x2xf32>
    %cst_54 = arith.constant dense<0.000000e+00> : vector<2x2xf32>
    %106 = tpu.matmul %104, %105, %cst_54 {dimension_numbers = #tpu.dot_dimension_numbers<[1], [0], [0], [1], [0, 0, 1, 1], [], []>} : vector<2x20xf32>, vector<20x2xf32>, vector<2x2xf32> -> vector<2x2xf32>
    %c0_55 = arith.constant 0 : index
    %c0_56 = arith.constant 0 : index
    %107 = vector.load %arg16[%c0_55, %c0_56] : memref<1x2xf32, #tpu.memory_space<vmem>>, vector<1x2xf32>
    %108 = vector.broadcast %107 : vector<1x2xf32> to vector<2x2xf32>
    %109 = arith.addf %106, %108 : vector<2x2xf32>
    %c0_57 = arith.constant 0 : index
    %c0_58 = arith.constant 0 : index
    %110 = vector.load %arg17[%c0_57, %c0_58] : memref<2x2xf32, #tpu.memory_space<vmem>>, vector<2x2xf32>
    tpu.vector_store %arg17[%c0_57, %c0_58], %109 {strides = array<i32>} : memref<2x2xf32, #tpu.memory_space<vmem>>, vector<2x2xf32>,
    return
  }
}

</mosaic_0001>

<llo_original>
// kernel: tpu_custom_call.1
$region0: #{tpu_custom_call.1}
  #allocation0 [shape = 'u32[]', space=smem, size = 0x4, offset = 0x4, fixed_abs, tag = 'smem constant byte address 0x4 - core index']
  #allocation1 [shape = 'u32[144,128]{1,0:T(1,128)}', space=vmem, size = 0x12000, scoped, tag = 'internal scratch']
  %s0 = inlined_call_operand.vmem [shape: f32[16,20], index: 0, kind: input, shape index: {}]
  %s1 = inlined_call_operand.vmem [shape: f32[20,60], index: 1, kind: input, shape index: {}]
  %s2 = inlined_call_operand.vmem [shape: f32[1,60], index: 2, kind: input, shape index: {}]
  %s3 = inlined_call_operand.vmem [shape: f32[20,20], index: 3, kind: input, shape index: {}]
  %s4 = inlined_call_operand.vmem [shape: f32[1,20], index: 4, kind: input, shape index: {}]
  %s5 = inlined_call_operand.hbm [shape: f32[1,20], index: 5, kind: input, shape index: {}]
  %s6 = inlined_call_operand.hbm [shape: f32[1,20], index: 6, kind: input, shape index: {}]
  %s7 = inlined_call_operand.vmem [shape: f32[20,72], index: 7, kind: input, shape index: {}]
  %s8 = inlined_call_operand.hbm [shape: f32[1,72], index: 8, kind: input, shape index: {}]
  %s9 = inlined_call_operand.vmem [shape: f32[72,20], index: 9, kind: input, shape index: {}]
  %s10 = inlined_call_operand.hbm [shape: f32[1,20], index: 10, kind: input, shape index: {}]
  %s11 = inlined_call_operand.vmem [shape: f32[1,20], index: 11, kind: input, shape index: {}]
  %s12 = inlined_call_operand.vmem [shape: f32[1,20], index: 12, kind: input, shape index: {}]
  %s13 = inlined_call_operand.vmem [shape: f32[20,20], index: 13, kind: input, shape index: {}]
  %s14 = inlined_call_operand.vmem [shape: f32[1,20], index: 14, kind: input, shape index: {}]
  %s15 = inlined_call_operand.vmem [shape: f32[20,2], index: 15, kind: input, shape index: {}]
  %s16 = inlined_call_operand.vmem [shape: f32[1,2], index: 16, kind: input, shape index: {}]
  %s17 = inlined_call_operand.hbm [shape: f32[2,2], index: 17, kind: output, shape index: {}]
  %s18 = sld [smem:[#allocation0]]
  $region94: #{tpu_custom_call.1} parent=0
    _
  %s20 = ssub.s32 1, %s18
  %s21 = scalar_select 0, %s20, %s18
  $region1: #{tpu_custom_call.1} parent=0
    #allocation2 [shape = 'u8[512]{0}', space=vmem, size = 0x400, scoped, tag = 'input window, operand 5, single buffered']
    #allocation3 [shape = 's32[1]{0}', space=sflag, size = 0x4, scoped, tag = 'scoped memory for tpu_custom_call.1']
    #allocation4 [shape = 's32[1]{0}', space=sflag, size = 0x4, scoped, tag = 'scoped memory for tpu_custom_call.1']
    #allocation5 [shape = 'u8[512]{0}', space=vmem, size = 0x400, scoped, tag = 'input window, operand 6, single buffered']
    #allocation6 [shape = 's32[1]{0}', space=sflag, size = 0x4, scoped, tag = 'scoped memory for tpu_custom_call.1']
    #allocation7 [shape = 'u8[512]{0}', space=vmem, size = 0x400, scoped, tag = 'input window, operand 8, single buffered']
    #allocation8 [shape = 'u8[512]{0}', space=vmem, size = 0x400, scoped, tag = 'input window, operand 10, single buffered']
    #allocation9 [shape = 's32[1]{0}', space=sflag, size = 0x4, scoped, tag = 'scoped memory for tpu_custom_call.1']
    #allocation10 [shape = 'u8[1024]{0}', space=vmem, size = 0x400, scoped, tag = 'output window, operand 0, single buffered']
    %22 = vsyncpa [#allocation3], 0
    %23 = vsyncpa [#allocation6], 0
    %24 = vsyncpa [#allocation9], 0
    %25 = vsyncpa [#allocation4], 0
    // Predicated region
    $region2: #{tpu_custom_call.1} parent=1 // pred_check
      _
    $region3: #{tpu_custom_call.1} parent=1 // pred_check_branch
      %27 = sbr.rel (0) target = $region5
    $region4: #{tpu_custom_call.1} parent=1 // pred_region
      _
    $region5: #{tpu_custom_call.1} parent=1 // pred_fallthru
      _
    // Predicated region
    $region6: #{tpu_custom_call.1} parent=1 // pred_check
      _
    $region7: #{tpu_custom_call.1} parent=1 // pred_check_branch
      %29 = sbr.rel (0) target = $region9
    $region8: #{tpu_custom_call.1} parent=1 // pred_region
      _
    $region9: #{tpu_custom_call.1} parent=1 // pred_fallthru
      _
    // Predicated region
    $region10: #{tpu_custom_call.1} parent=1 // pred_check
      _
    $region11: #{tpu_custom_call.1} parent=1 // pred_check_branch
      %31 = sbr.rel (0) target = $region13
    $region12: #{tpu_custom_call.1} parent=1 // pred_region
      _
    $region13: #{tpu_custom_call.1} parent=1 // pred_fallthru
      _
    // Predicated region
    $region14: #{tpu_custom_call.1} parent=1 // pred_check
      _
    $region15: #{tpu_custom_call.1} parent=1 // pred_check_branch
      %33 = sbr.rel (0) target = $region17
    $region16: #{tpu_custom_call.1} parent=1 // pred_region
      _
    $region17: #{tpu_custom_call.1} parent=1 // pred_fallthru
      _
    // Predicated region
    $region18: #{tpu_custom_call.1} parent=1 // pred_check
      _
    $region19: #{tpu_custom_call.1} parent=1 // pred_check_branch
      %35 = sbr.rel (0) target = $region21
    $region20: #{tpu_custom_call.1} parent=1 // pred_region
      _
    $region21: #{tpu_custom_call.1} parent=1 // pred_fallthru
      _
    // Predicated region
    $region22: #{tpu_custom_call.1} parent=1 // pred_check
      _
    $region23: #{tpu_custom_call.1} parent=1 // pred_check_branch
      %37 = sbr.rel (0) target = $region25
    $region24: #{tpu_custom_call.1} parent=1 // pred_region
      %s39 = ssub.s32 16, 16
      %40 = vsyncadd [#allocation3], %s39
      %s42 = sshll.u32 [#allocation2], 4
      %s43 = int_to_ptr.vmem [resolvable:$true] %s42
      %45 = dma.hbm_to_vmem [thread:$0]  %s5, 16, %s43, [#allocation3]
    $region25: #{tpu_custom_call.1} parent=1 // pred_fallthru
      _
    // Predicated region
    $region26: #{tpu_custom_call.1} parent=1 // pred_check
      _
    $region27: #{tpu_custom_call.1} parent=1 // pred_check_branch
      %47 = sbr.rel (0) target = $region29
    $region28: #{tpu_custom_call.1} parent=1 // pred_region
      %s49 = ssub.s32 16, 16
      %50 = vsyncadd [#allocation6], %s49
      %s52 = sshll.u32 [#allocation5], 4
      %s53 = int_to_ptr.vmem [resolvable:$true] %s52
      %55 = dma.hbm_to_vmem [thread:$0]  %s6, 16, %s53, [#allocation6]
    $region29: #{tpu_custom_call.1} parent=1 // pred_fallthru
      _
    // Predicated region
    $region30: #{tpu_custom_call.1} parent=1 // pred_check
      _
    $region31: #{tpu_custom_call.1} parent=1 // pred_check_branch
      %57 = sbr.rel (0) target = $region33
    $region32: #{tpu_custom_call.1} parent=1 // pred_region
      _
    $region33: #{tpu_custom_call.1} parent=1 // pred_fallthru
      _
    // Predicated region
    $region34: #{tpu_custom_call.1} parent=1 // pred_check
      _
    $region35: #{tpu_custom_call.1} parent=1 // pred_check_branch
      %59 = sbr.rel (0) target = $region37
    $region36: #{tpu_custom_call.1} parent=1 // pred_region
      %s61 = ssub.s32 16, 16
      %62 = vsyncadd [#allocation6], %s61
      %s64 = sshll.u32 [#allocation7], 4
      %s65 = int_to_ptr.vmem [resolvable:$true] %s64
      %67 = dma.hbm_to_vmem [thread:$0]  %s8, 16, %s65, [#allocation6]
    $region37: #{tpu_custom_call.1} parent=1 // pred_fallthru
      _
    // Predicated region
    $region38: #{tpu_custom_call.1} parent=1 // pred_check
      _
    $region39: #{tpu_custom_call.1} parent=1 // pred_check_branch
      %69 = sbr.rel (0) target = $region41
    $region40: #{tpu_custom_call.1} parent=1 // pred_region
      _
    $region41: #{tpu_custom_call.1} parent=1 // pred_fallthru
      _
    // Predicated region
    $region42: #{tpu_custom_call.1} parent=1 // pred_check
      _
    $region43: #{tpu_custom_call.1} parent=1 // pred_check_branch
      %71 = sbr.rel (0) target = $region45
    $region44: #{tpu_custom_call.1} parent=1 // pred_region
      %s73 = ssub.s32 16, 16
      %74 = vsyncadd [#allocation9], %s73
      %s76 = sshll.u32 [#allocation8], 4
      %s77 = int_to_ptr.vmem [resolvable:$true] %s76
      %79 = dma.hbm_to_vmem [thread:$0]  %s10, 16, %s77, [#allocation9]
    $region45: #{tpu_custom_call.1} parent=1 // pred_fallthru
      _
    // Predicated region
    $region46: #{tpu_custom_call.1} parent=1 // pred_check
      _
    $region47: #{tpu_custom_call.1} parent=1 // pred_check_branch
      %81 = sbr.rel (0) target = $region49
    $region48: #{tpu_custom_call.1} parent=1 // pred_region
      _
    $region49: #{tpu_custom_call.1} parent=1 // pred_fallthru
      _
    // Predicated region
    $region50: #{tpu_custom_call.1} parent=1 // pred_check
      _
    $region51: #{tpu_custom_call.1} parent=1 // pred_check_branch
      %83 = sbr.rel (0) target = $region53
    $region52: #{tpu_custom_call.1} parent=1 // pred_region
      _
    $region53: #{tpu_custom_call.1} parent=1 // pred_fallthru
      _
    // Predicated region
    $region54: #{tpu_custom_call.1} parent=1 // pred_check
      _
    $region55: #{tpu_custom_call.1} parent=1 // pred_check_branch
      %85 = sbr.rel (0) target = $region57
    $region56: #{tpu_custom_call.1} parent=1 // pred_region
      _
    $region57: #{tpu_custom_call.1} parent=1 // pred_fallthru
      _
    // Predicated region
    $region58: #{tpu_custom_call.1} parent=1 // pred_check
      _
    $region59: #{tpu_custom_call.1} parent=1 // pred_check_branch
      %87 = sbr.rel (0) target = $region61
    $region60: #{tpu_custom_call.1} parent=1 // pred_region
      _
    $region61: #{tpu_custom_call.1} parent=1 // pred_fallthru
      _
    // Predicated region
    $region62: #{tpu_custom_call.1} parent=1 // pred_check
      _
    $region63: #{tpu_custom_call.1} parent=1 // pred_check_branch
      %89 = sbr.rel (0) target = $region65
    $region64: #{tpu_custom_call.1} parent=1 // pred_region
      _
    $region65: #{tpu_custom_call.1} parent=1 // pred_fallthru
      _
    // Predicated region
    $region66: #{tpu_custom_call.1} parent=1 // pred_check
      _
    $region67: #{tpu_custom_call.1} parent=1 // pred_check_branch
      %91 = sbr.rel (0) target = $region69
    $region68: #{tpu_custom_call.1} parent=1 // pred_region
      _
    $region69: #{tpu_custom_call.1} parent=1 // pred_fallthru
      _
    // Predicated region
    $region70: #{tpu_custom_call.1} parent=1 // pred_check
      _
    $region71: #{tpu_custom_call.1} parent=1 // pred_check_branch
      %93 = sbr.rel (0) target = $region73
    $region72: #{tpu_custom_call.1} parent=1 // pred_region
      %94 = dma.done [#allocation3], 16
    $region73: #{tpu_custom_call.1} parent=1 // pred_fallthru
      _
    // Predicated region
    $region74: #{tpu_custom_call.1} parent=1 // pred_check
      _
    $region75: #{tpu_custom_call.1} parent=1 // pred_check_branch
      %96 = sbr.rel (0) target = $region77
    $region76: #{tpu_custom_call.1} parent=1 // pred_region
      %97 = dma.done [#allocation6], 16
    $region77: #{tpu_custom_call.1} parent=1 // pred_fallthru
      _
    // Predicated region
    $region78: #{tpu_custom_call.1} parent=1 // pred_check
      _
    $region79: #{tpu_custom_call.1} parent=1 // pred_check_branch
      %99 = sbr.rel (0) target = $region81
    $region80: #{tpu_custom_call.1} parent=1 // pred_region
      %100 = dma.done [#allocation6], 16
    $region81: #{tpu_custom_call.1} parent=1 // pred_fallthru
      _
    // Predicated region
    $region82: #{tpu_custom_call.1} parent=1 // pred_check
      _
    $region83: #{tpu_custom_call.1} parent=1 // pred_check_branch
      %102 = sbr.rel (0) target = $region85
    $region84: #{tpu_custom_call.1} parent=1 // pred_region
      %103 = dma.done [#allocation9], 16
    $region85: #{tpu_custom_call.1} parent=1 // pred_fallthru
      _
    %v104 = vld [vmem:[%s0] sm:$0xff]
    %v105 = vld [vmem:[%s0 + $0x8] sm:$0xff]
    %v106 = vld [vmem:[%s1] sm:$0xff]
    %v107 = vld [vmem:[%s1 + $0x8] sm:$0xff]
    %v108 = vld [vmem:[%s1 + $0x10] sm:$0xf]
    %v109 = vld [vmem:[%s2] sm:$0x1]
    %v111 = vlaneseq
    %v112 = vshrl.u32 %v111, 7
    %v113 = vsub.s32 0, %v112
    %v114 = vrot.slane %v109, %v113
    %vm116 = vcmask 162816
    %v118 = vsel %vm116, %v104, 0
    %v121 = vsel %vm116, %v105, 0
    %vm123 = vcmask 1043456
    %v125 = vsel %vm123, %v108, 0
    %127 = vmatprep.subr.mxu0 0.0
    %128 = vmatpush1.msra.mxu0 0.0
    %129 = vmatprep.subr.mxu0 0.0
    %130 = vmatpush1.msra.mxu0 0.0
    %131 = vmatprep.subr.mxu0 0.0
    %132 = vmatpush1.msra.mxu0 0.0
    %133 = vmatprep.subr.mxu0 0.0
    %134 = vmatpush1.msra.mxu0 0.0
    %135 = vmatprep.subr.mxu0 0.0
    %136 = vmatpush1.msra.mxu0 0.0
    %137 = vmatprep.subr.mxu0 0.0
    %138 = vmatpush1.msra.mxu0 0.0
    %139 = vmatprep.subr.mxu0 0.0
    %140 = vmatpush1.msra.mxu0 0.0
    %141 = vmatprep.subr.mxu0 0.0
    %142 = vmatpush1.msra.mxu0 0.0
    %143 = vmatprep.subr.mxu0 0.0
    %144 = vmatpush1.msra.mxu0 0.0
    %145 = vmatprep.subr.mxu0 0.0
    %146 = vmatpush1.msra.mxu0 0.0
    %147 = vmatprep.subr.mxu0 0.0
    %148 = vmatpush1.msra.mxu0 0.0
    %149 = vmatprep.subr.mxu0 0.0
    %150 = vmatpush1.msra.mxu0 0.0
    %151 = vmatprep.subr.mxu0 0.0
    %152 = vmatpush1.msra.mxu0 0.0
    %153 = vmatprep.subr.mxu0 0.0
    %154 = vmatpush1.msra.mxu0 %v125
    %155 = vmatprep.subr.mxu0 0.0
    %156 = vmatpush1.msra.mxu0 %v107
    %157 = vmatprep.subr.mxu0 0.0
    %158 = vmatpush1.msra.mxu0 %v106
    %159 = vmatprep.subr.mxu0 0.0
    %160 = vmatpush2.msra.mxu0 0.0
    %161 = vmatprep.subr.mxu0 0.0
    %162 = vmatpush2.msra.mxu0 0.0
    %163 = vmatprep.subr.mxu0 0.0
    %164 = vmatpush2.msra.mxu0 0.0
    %165 = vmatprep.subr.mxu0 0.0
    %166 = vmatpush2.msra.mxu0 0.0
    %167 = vmatprep.subr.mxu0 0.0
    %168 = vmatpush2.msra.mxu0 0.0
    %169 = vmatprep.subr.mxu0 0.0
    %170 = vmatpush2.msra.mxu0 0.0
    %171 = vmatprep.subr.mxu0 0.0
    %172 = vmatpush2.msra.mxu0 0.0
    %173 = vmatprep.subr.mxu0 0.0
    %174 = vmatpush2.msra.mxu0 0.0
    %175 = vmatprep.subr.mxu0 0.0
    %176 = vmatpush2.msra.mxu0 0.0
    %177 = vmatprep.subr.mxu0 0.0
    %178 = vmatpush2.msra.mxu0 0.0
    %179 = vmatprep.subr.mxu0 0.0
    %180 = vmatpush2.msra.mxu0 0.0
    %181 = vmatprep.subr.mxu0 0.0
    %182 = vmatpush2.msra.mxu0 0.0
    %183 = vmatprep.subr.mxu0 0.0
    %184 = vmatpush2.msra.mxu0 0.0
    %185 = vmatprep.subr.mxu0 0.0
    %186 = vmatpush2.msra.mxu0 0.0
    %187 = vmatprep.subr.mxu0 0.0
    %188 = vmatpush2.msra.mxu0 0.0
    %189 = vmatprep.subr.mxu0 0.0
    %190 = vmatpush2.msra.mxu0 0.0
    %191 = vmatprep.mubr.f32.mxu0 0.0
    %192 = vmatmul.mubr.f32.gmra.mxu0 %v118
    %v193 = vpop.f32.mrf.mxu0
    %v194 = vadd.f32 %v114, %v193
    %v195 = vpop.f32.mrf.mxu0
    %196 = vmatprep.mubr.f32.mxu0 0.0
    %197 = vmatmul.mubr.f32.gmra.mxu0 %v121
    %v198 = vpop.f32.mrf.mxu0
    %v199 = vadd.f32 %v114, %v198
    %v200 = vpop.f32.mrf.mxu0
    %201 = vdwg.mxu0
    %203 = vrot.lane.b32.xlu0 %v194, 108
    %v204 = vpop.permute.xlu0 %203
    %v205 = vsel %vm116, %v194, 0
    %v207 = vsel %vm116, %v204, 0
    %209 = vmatprep.subr.mxu0 0.0
    %210 = vmatpush1.xpose.msra.mxu0 0.0
    %211 = vmatprep.subr.mxu0 0.0
    %212 = vmatpush1.xpose.msra.mxu0 0.0
    %213 = vmatprep.subr.mxu0 0.0
    %214 = vmatpush1.xpose.msra.mxu0 0.0
    %215 = vmatprep.subr.mxu0 0.0
    %216 = vmatpush1.xpose.msra.mxu0 0.0
    %217 = vmatprep.subr.mxu0 0.0
    %218 = vmatpush1.xpose.msra.mxu0 0.0
    %219 = vmatprep.subr.mxu0 0.0
    %220 = vmatpush1.xpose.msra.mxu0 0.0
    %221 = vmatprep.subr.mxu0 0.0
    %222 = vmatpush1.xpose.msra.mxu0 0.0
    %223 = vmatprep.subr.mxu0 0.0
    %224 = vmatpush1.xpose.msra.mxu0 0.0
    %225 = vmatprep.subr.mxu0 0.0
    %226 = vmatpush1.xpose.msra.mxu0 0.0
    %227 = vmatprep.subr.mxu0 0.0
    %228 = vmatpush1.xpose.msra.mxu0 0.0
    %229 = vmatprep.subr.mxu0 0.0
    %230 = vmatpush1.xpose.msra.mxu0 0.0
    %231 = vmatprep.subr.mxu0 0.0
    %232 = vmatpush1.xpose.msra.mxu0 0.0
    %233 = vmatprep.subr.mxu0 0.0
    %234 = vmatpush1.xpose.msra.mxu0 0.0
    %235 = vmatprep.subr.mxu0 0.0
    %236 = vmatpush1.xpose.msra.mxu0 0.0
    %237 = vmatprep.subr.mxu0 0.0
    %238 = vmatpush1.xpose.msra.mxu0 0.0
    %239 = vmatprep.subr.mxu0 0.0
    %240 = vmatpush1.xpose.msra.mxu0 %v207
    %241 = vmatprep.subr.mxu0 0.0
    %242 = vmatpush2.xpose.msra.mxu0 0.0
    %243 = vmatprep.subr.mxu0 0.0
    %244 = vmatpush2.xpose.msra.mxu0 0.0
    %245 = vmatprep.subr.mxu0 0.0
    %246 = vmatpush2.xpose.msra.mxu0 0.0
    %247 = vmatprep.subr.mxu0 0.0
    %248 = vmatpush2.xpose.msra.mxu0 0.0
    %249 = vmatprep.subr.mxu0 0.0
    %250 = vmatpush2.xpose.msra.mxu0 0.0
    %251 = vmatprep.subr.mxu0 0.0
    %252 = vmatpush2.xpose.msra.mxu0 0.0
    %253 = vmatprep.subr.mxu0 0.0
    %254 = vmatpush2.xpose.msra.mxu0 0.0
    %255 = vmatprep.subr.mxu0 0.0
    %256 = vmatpush2.xpose.msra.mxu0 0.0
    %257 = vmatprep.subr.mxu0 0.0
    %258 = vmatpush2.xpose.msra.mxu0 0.0
    %259 = vmatprep.subr.mxu0 0.0
    %260 = vmatpush2.xpose.msra.mxu0 0.0
    %261 = vmatprep.subr.mxu0 0.0
    %262 = vmatpush2.xpose.msra.mxu0 0.0
    %263 = vmatprep.subr.mxu0 0.0
    %264 = vmatpush2.xpose.msra.mxu0 0.0
    %265 = vmatprep.subr.mxu0 0.0
    %266 = vmatpush2.xpose.msra.mxu0 0.0
    %267 = vmatprep.subr.mxu0 0.0
    %268 = vmatpush2.xpose.msra.mxu0 0.0
    %269 = vmatprep.subr.mxu0 0.0
    %270 = vmatpush2.xpose.msra.mxu0 0.0
    %271 = vmatprep.subr.mxu0 0.0
    %272 = vmatpush2.xpose.msra.mxu0 0.0
    %273 = vmatprep.mubr.f32.mxu0 0.0
    %274 = vmatmul.mubr.f32.gmra.mxu0 %v205
    %v275 = vpop.f32.mrf.mxu0
    %v276 = vadd.f32 0.0, %v275
    %v277 = vpop.f32.mrf.mxu0
    %278 = vdwg.mxu0
    %280 = vrot.lane.b32.xlu0 %v199, 108
    %v281 = vpop.permute.xlu0 %280
    %v282 = vsel %vm116, %v199, 0
    %v284 = vsel %vm116, %v281, 0
    %286 = vmatprep.subr.mxu0 0.0
    %287 = vmatpush1.xpose.msra.mxu0 0.0
    %288 = vmatprep.subr.mxu0 0.0
    %289 = vmatpush1.xpose.msra.mxu0 0.0
    %290 = vmatprep.subr.mxu0 0.0
    %291 = vmatpush1.xpose.msra.mxu0 0.0
    %292 = vmatprep.subr.mxu0 0.0
    %293 = vmatpush1.xpose.msra.mxu0 0.0
    %294 = vmatprep.subr.mxu0 0.0
    %295 = vmatpush1.xpose.msra.mxu0 0.0
    %296 = vmatprep.subr.mxu0 0.0
    %297 = vmatpush1.xpose.msra.mxu0 0.0
    %298 = vmatprep.subr.mxu0 0.0
    %299 = vmatpush1.xpose.msra.mxu0 0.0
    %300 = vmatprep.subr.mxu0 0.0
    %301 = vmatpush1.xpose.msra.mxu0 0.0
    %302 = vmatprep.subr.mxu0 0.0
    %303 = vmatpush1.xpose.msra.mxu0 0.0
    %304 = vmatprep.subr.mxu0 0.0
    %305 = vmatpush1.xpose.msra.mxu0 0.0
    %306 = vmatprep.subr.mxu0 0.0
    %307 = vmatpush1.xpose.msra.mxu0 0.0
    %308 = vmatprep.subr.mxu0 0.0
    %309 = vmatpush1.xpose.msra.mxu0 0.0
    %310 = vmatprep.subr.mxu0 0.0
    %311 = vmatpush1.xpose.msra.mxu0 0.0
    %312 = vmatprep.subr.mxu0 0.0
    %313 = vmatpush1.xpose.msra.mxu0 0.0
    %314 = vmatprep.subr.mxu0 0.0
    %315 = vmatpush1.xpose.msra.mxu0 0.0
    %316 = vmatprep.subr.mxu0 0.0
    %317 = vmatpush1.xpose.msra.mxu0 %v284
    %318 = vmatprep.subr.mxu0 0.0
    %319 = vmatpush2.xpose.msra.mxu0 0.0
    %320 = vmatprep.subr.mxu0 0.0
    %321 = vmatpush2.xpose.msra.mxu0 0.0
    %322 = vmatprep.subr.mxu0 0.0
    %323 = vmatpush2.xpose.msra.mxu0 0.0
    %324 = vmatprep.subr.mxu0 0.0
    %325 = vmatpush2.xpose.msra.mxu0 0.0
    %326 = vmatprep.subr.mxu0 0.0
    %327 = vmatpush2.xpose.msra.mxu0 0.0
    %328 = vmatprep.subr.mxu0 0.0
    %329 = vmatpush2.xpose.msra.mxu0 0.0
    %330 = vmatprep.subr.mxu0 0.0
    %331 = vmatpush2.xpose.msra.mxu0 0.0
    %332 = vmatprep.subr.mxu0 0.0
    %333 = vmatpush2.xpose.msra.mxu0 0.0
    %334 = vmatprep.subr.mxu0 0.0
    %335 = vmatpush2.xpose.msra.mxu0 0.0
    %336 = vmatprep.subr.mxu0 0.0
    %337 = vmatpush2.xpose.msra.mxu0 0.0
    %338 = vmatprep.subr.mxu0 0.0
    %339 = vmatpush2.xpose.msra.mxu0 0.0
    %340 = vmatprep.subr.mxu0 0.0
    %341 = vmatpush2.xpose.msra.mxu0 0.0
    %342 = vmatprep.subr.mxu0 0.0
    %343 = vmatpush2.xpose.msra.mxu0 0.0
    %344 = vmatprep.subr.mxu0 0.0
    %345 = vmatpush2.xpose.msra.mxu0 0.0
    %346 = vmatprep.subr.mxu0 0.0
    %347 = vmatpush2.xpose.msra.mxu0 0.0
    %348 = vmatprep.subr.mxu0 0.0
    %349 = vmatpush2.xpose.msra.mxu0 0.0
    %350 = vmatprep.mubr.f32.mxu0 0.0
    %351 = vmatmul.mubr.f32.gmra.mxu0 %v282
    %v352 = vpop.f32.mrf.mxu0
    %v353 = vadd.f32 0.0, %v352
    %v354 = vpop.f32.mrf.mxu0
    %355 = vdwg.mxu0
    %v356 = vmul.f32 %v276, 0.2236068
    %v357 = vmul.f32 %v353, 0.2236068
    %vm358 = vcmask 64512
    %v359 = vsel %vm358, %v356, -inf
    %360 = vmax.xlane.f32.xlu0 %v359
    %v361 = vpop.xlane.xlu0 %360
    %v362 = vsel %vm358, %v357, -inf
    %363 = vmax.xlane.f32.xlu0 %v362
    %v364 = vpop.xlane.xlu0 %363
    %v365 = vsub.f32 %v356, %v361
    %v366 = vsub.f32 %v357, %v364
    %v367 = vmul.f32 %v365, 1.442695
    %v368 = vpow.pop %v367
    %v369 = vmul.f32 %v366, 1.442695
    %v370 = vpow.pop %v369
    %v371 = vsel %vm358, %v368, 0.0
    %372 = vadd.xlane.f32.xlu0 %v371
    %v373 = vpop.xlane.xlu0 %372
    %v374 = vsel %vm358, %v370, 0.0
    %375 = vadd.xlane.f32.xlu0 %v374
    %v376 = vpop.xlane.xlu0 %375
    %v377 = vrcp.pop %v373
    %v378 = vrcp.pop %v376
    %v379 = vmul.f32 %v368, %v377
    %v380 = vmul.f32 %v370, %v378
    %381 = vrot.lane.b32.xlu0 %v194, 88
    %v382 = vpop.permute.xlu0 %381
    %v385 = vsel %vm358, %v379, 0
    %387 = vmatprep.subr.mxu0 0.0
    %388 = vmatpush1.msra.mxu0 0.0
    %389 = vmatprep.subr.mxu0 0.0
    %390 = vmatpush1.msra.mxu0 0.0
    %391 = vmatprep.subr.mxu0 0.0
    %392 = vmatpush1.msra.mxu0 0.0
    %393 = vmatprep.subr.mxu0 0.0
    %394 = vmatpush1.msra.mxu0 0.0
    %395 = vmatprep.subr.mxu0 0.0
    %396 = vmatpush1.msra.mxu0 0.0
    %397 = vmatprep.subr.mxu0 0.0
    %398 = vmatpush1.msra.mxu0 0.0
    %399 = vmatprep.subr.mxu0 0.0
    %400 = vmatpush1.msra.mxu0 0.0
    %401 = vmatprep.subr.mxu0 0.0
    %402 = vmatpush1.msra.mxu0 0.0
    %403 = vmatprep.subr.mxu0 0.0
    %404 = vmatpush1.msra.mxu0 0.0
    %405 = vmatprep.subr.mxu0 0.0
    %406 = vmatpush1.msra.mxu0 0.0
    %407 = vmatprep.subr.mxu0 0.0
    %408 = vmatpush1.msra.mxu0 0.0
    %409 = vmatprep.subr.mxu0 0.0
    %410 = vmatpush1.msra.mxu0 0.0
    %411 = vmatprep.subr.mxu0 0.0
    %412 = vmatpush1.msra.mxu0 0.0
    %413 = vmatprep.subr.mxu0 0.0
    %414 = vmatpush1.msra.mxu0 0.0
    %415 = vmatprep.subr.mxu0 0.0
    %416 = vmatpush1.msra.mxu0 0.0
    %417 = vmatprep.subr.mxu0 0.0
    %418 = vmatpush1.msra.mxu0 %v382
    %419 = vmatprep.subr.mxu0 0.0
    %420 = vmatpush2.msra.mxu0 0.0
    %421 = vmatprep.subr.mxu0 0.0
    %422 = vmatpush2.msra.mxu0 0.0
    %423 = vmatprep.subr.mxu0 0.0
    %424 = vmatpush2.msra.mxu0 0.0
    %425 = vmatprep.subr.mxu0 0.0
    %426 = vmatpush2.msra.mxu0 0.0
    %427 = vmatprep.subr.mxu0 0.0
    %428 = vmatpush2.msra.mxu0 0.0
    %429 = vmatprep.subr.mxu0 0.0
    %430 = vmatpush2.msra.mxu0 0.0
    %431 = vmatprep.subr.mxu0 0.0
    %432 = vmatpush2.msra.mxu0 0.0
    %433 = vmatprep.subr.mxu0 0.0
    %434 = vmatpush2.msra.mxu0 0.0
    %435 = vmatprep.subr.mxu0 0.0
    %436 = vmatpush2.msra.mxu0 0.0
    %437 = vmatprep.subr.mxu0 0.0
    %438 = vmatpush2.msra.mxu0 0.0
    %439 = vmatprep.subr.mxu0 0.0
    %440 = vmatpush2.msra.mxu0 0.0
    %441 = vmatprep.subr.mxu0 0.0
    %442 = vmatpush2.msra.mxu0 0.0
    %443 = vmatprep.subr.mxu0 0.0
    %444 = vmatpush2.msra.mxu0 0.0
    %445 = vmatprep.subr.mxu0 0.0
    %446 = vmatpush2.msra.mxu0 0.0
    %447 = vmatprep.subr.mxu0 0.0
    %448 = vmatpush2.msra.mxu0 0.0
    %449 = vmatprep.subr.mxu0 0.0
    %450 = vmatpush2.msra.mxu0 0.0
    %451 = vmatprep.mubr.f32.mxu0 0.0
    %452 = vmatmul.mubr.f32.gmra.mxu0 %v385
    %v453 = vpop.f32.mrf.mxu0
    %v454 = vadd.f32 0.0, %v453
    %v455 = vpop.f32.mrf.mxu0
    %456 = vdwg.mxu0
    %457 = vrot.lane.b32.xlu0 %v199, 88
    %v458 = vpop.permute.xlu0 %457
    %v461 = vsel %vm358, %v380, 0
    %463 = vmatprep.subr.mxu0 0.0
    %464 = vmatpush1.msra.mxu0 0.0
    %465 = vmatprep.subr.mxu0 0.0
    %466 = vmatpush1.msra.mxu0 0.0
    %467 = vmatprep.subr.mxu0 0.0
    %468 = vmatpush1.msra.mxu0 0.0
    %469 = vmatprep.subr.mxu0 0.0
    %470 = vmatpush1.msra.mxu0 0.0
    %471 = vmatprep.subr.mxu0 0.0
    %472 = vmatpush1.msra.mxu0 0.0
    %473 = vmatprep.subr.mxu0 0.0
    %474 = vmatpush1.msra.mxu0 0.0
    %475 = vmatprep.subr.mxu0 0.0
    %476 = vmatpush1.msra.mxu0 0.0
    %477 = vmatprep.subr.mxu0 0.0
    %478 = vmatpush1.msra.mxu0 0.0
    %479 = vmatprep.subr.mxu0 0.0
    %480 = vmatpush1.msra.mxu0 0.0
    %481 = vmatprep.subr.mxu0 0.0
    %482 = vmatpush1.msra.mxu0 0.0
    %483 = vmatprep.subr.mxu0 0.0
    %484 = vmatpush1.msra.mxu0 0.0
    %485 = vmatprep.subr.mxu0 0.0
    %486 = vmatpush1.msra.mxu0 0.0
    %487 = vmatprep.subr.mxu0 0.0
    %488 = vmatpush1.msra.mxu0 0.0
    %489 = vmatprep.subr.mxu0 0.0
    %490 = vmatpush1.msra.mxu0 0.0
    %491 = vmatprep.subr.mxu0 0.0
    %492 = vmatpush1.msra.mxu0 0.0
    %493 = vmatprep.subr.mxu0 0.0
    %494 = vmatpush1.msra.mxu0 %v458
    %495 = vmatprep.subr.mxu0 0.0
    %496 = vmatpush2.msra.mxu0 0.0
    %497 = vmatprep.subr.mxu0 0.0
    %498 = vmatpush2.msra.mxu0 0.0
    %499 = vmatprep.subr.mxu0 0.0
    %500 = vmatpush2.msra.mxu0 0.0
    %501 = vmatprep.subr.mxu0 0.0
    %502 = vmatpush2.msra.mxu0 0.0
    %503 = vmatprep.subr.mxu0 0.0
    %504 = vmatpush2.msra.mxu0 0.0
    %505 = vmatprep.subr.mxu0 0.0
    %506 = vmatpush2.msra.mxu0 0.0
    %507 = vmatprep.subr.mxu0 0.0
    %508 = vmatpush2.msra.mxu0 0.0
    %509 = vmatprep.subr.mxu0 0.0
    %510 = vmatpush2.msra.mxu0 0.0
    %511 = vmatprep.subr.mxu0 0.0
    %512 = vmatpush2.msra.mxu0 0.0
    %513 = vmatprep.subr.mxu0 0.0
    %514 = vmatpush2.msra.mxu0 0.0
    %515 = vmatprep.subr.mxu0 0.0
    %516 = vmatpush2.msra.mxu0 0.0
    %517 = vmatprep.subr.mxu0 0.0
    %518 = vmatpush2.msra.mxu0 0.0
    %519 = vmatprep.subr.mxu0 0.0
    %520 = vmatpush2.msra.mxu0 0.0
    %521 = vmatprep.subr.mxu0 0.0
    %522 = vmatpush2.msra.mxu0 0.0
    %523 = vmatprep.subr.mxu0 0.0
    %524 = vmatpush2.msra.mxu0 0.0
    %525 = vmatprep.subr.mxu0 0.0
    %526 = vmatpush2.msra.mxu0 0.0
    %527 = vmatprep.mubr.f32.mxu0 0.0
    %528 = vmatmul.mubr.f32.gmra.mxu0 %v461
    %v529 = vpop.f32.mrf.mxu0
    %v530 = vadd.f32 0.0, %v529
    %v531 = vpop.f32.mrf.mxu0
    %532 = vdwg.mxu0
    %v533 = vld [vmem:[%s3] sm:$0xff]
    %v534 = vld [vmem:[%s3 + $0x8] sm:$0xff]
    %v535 = vld [vmem:[%s3 + $0x10] sm:$0xf]
    %v536 = vld [vmem:[%s4] sm:$0x1]
    %v538 = vlaneseq
    %v539 = vshrl.u32 %v538, 7
    %v540 = vsub.s32 0, %v539
    %v541 = vrot.slane %v536, %v540
    %v544 = vsel %vm116, %v454, 0
    %v547 = vsel %vm116, %v530, 0
    %v550 = vsel %vm123, %v535, 0
    %552 = vmatprep.subr.mxu0 0.0
    %553 = vmatpush1.msra.mxu0 0.0
    %554 = vmatprep.subr.mxu0 0.0
    %555 = vmatpush1.msra.mxu0 0.0
    %556 = vmatprep.subr.mxu0 0.0
    %557 = vmatpush1.msra.mxu0 0.0
    %558 = vmatprep.subr.mxu0 0.0
    %559 = vmatpush1.msra.mxu0 0.0
    %560 = vmatprep.subr.mxu0 0.0
    %561 = vmatpush1.msra.mxu0 0.0
    %562 = vmatprep.subr.mxu0 0.0
    %563 = vmatpush1.msra.mxu0 0.0
    %564 = vmatprep.subr.mxu0 0.0
    %565 = vmatpush1.msra.mxu0 0.0
    %566 = vmatprep.subr.mxu0 0.0
    %567 = vmatpush1.msra.mxu0 0.0
    %568 = vmatprep.subr.mxu0 0.0
    %569 = vmatpush1.msra.mxu0 0.0
    %570 = vmatprep.subr.mxu0 0.0
    %571 = vmatpush1.msra.mxu0 0.0
    %572 = vmatprep.subr.mxu0 0.0
    %573 = vmatpush1.msra.mxu0 0.0
    %574 = vmatprep.subr.mxu0 0.0
    %575 = vmatpush1.msra.mxu0 0.0
    %576 = vmatprep.subr.mxu0 0.0
    %577 = vmatpush1.msra.mxu0 0.0
    %578 = vmatprep.subr.mxu0 0.0
    %579 = vmatpush1.msra.mxu0 %v550
    %580 = vmatprep.subr.mxu0 0.0
    %581 = vmatpush1.msra.mxu0 %v534
    %582 = vmatprep.subr.mxu0 0.0
    %583 = vmatpush1.msra.mxu0 %v533
    %584 = vmatprep.subr.mxu0 0.0
    %585 = vmatpush2.msra.mxu0 0.0
    %586 = vmatprep.subr.mxu0 0.0
    %587 = vmatpush2.msra.mxu0 0.0
    %588 = vmatprep.subr.mxu0 0.0
    %589 = vmatpush2.msra.mxu0 0.0
    %590 = vmatprep.subr.mxu0 0.0
    %591 = vmatpush2.msra.mxu0 0.0
    %592 = vmatprep.subr.mxu0 0.0
    %593 = vmatpush2.msra.mxu0 0.0
    %594 = vmatprep.subr.mxu0 0.0
    %595 = vmatpush2.msra.mxu0 0.0
    %596 = vmatprep.subr.mxu0 0.0
    %597 = vmatpush2.msra.mxu0 0.0
    %598 = vmatprep.subr.mxu0 0.0
    %599 = vmatpush2.msra.mxu0 0.0
    %600 = vmatprep.subr.mxu0 0.0
    %601 = vmatpush2.msra.mxu0 0.0
    %602 = vmatprep.subr.mxu0 0.0
    %603 = vmatpush2.msra.mxu0 0.0
    %604 = vmatprep.subr.mxu0 0.0
    %605 = vmatpush2.msra.mxu0 0.0
    %606 = vmatprep.subr.mxu0 0.0
    %607 = vmatpush2.msra.mxu0 0.0
    %608 = vmatprep.subr.mxu0 0.0
    %609 = vmatpush2.msra.mxu0 0.0
    %610 = vmatprep.subr.mxu0 0.0
    %611 = vmatpush2.msra.mxu0 0.0
    %612 = vmatprep.subr.mxu0 0.0
    %613 = vmatpush2.msra.mxu0 0.0
    %614 = vmatprep.subr.mxu0 0.0
    %615 = vmatpush2.msra.mxu0 0.0
    %616 = vmatprep.mubr.f32.mxu0 0.0
    %617 = vmatmul.mubr.f32.gmra.mxu0 %v544
    %v618 = vpop.f32.mrf.mxu0
    %v619 = vadd.f32 %v541, %v618
    %v620 = vpop.f32.mrf.mxu0
    %621 = vmatprep.mubr.f32.mxu0 0.0
    %622 = vmatmul.mubr.f32.gmra.mxu0 %v547
    %v623 = vpop.f32.mrf.mxu0
    %v624 = vadd.f32 %v541, %v623
    %v625 = vpop.f32.mrf.mxu0
    %626 = vdwg.mxu0
    %v627 = vadd.f32 %v104, %v619
    %v628 = vadd.f32 %v105, %v624
    %v629 = vld [vmem:[#allocation2] sm:$0x1]
    %v630 = vld [vmem:[#allocation5] sm:$0x1]
    %v631 = vsel %vm116, %v627, 0.0
    %632 = vadd.xlane.f32.xlu0 %v631
    %v633 = vpop.xlane.xlu0 %632
    %v634 = vsel %vm116, %v628, 0.0
    %635 = vadd.xlane.f32.xlu0 %v634
    %v636 = vpop.xlane.xlu0 %635
    %v637 = vrcp.pop 20.0
    %v638 = vmul.f32 %v633, %v637
    %v639 = vmul.f32 %v636, %v637
    %v640 = vsub.f32 %v627, %v638
    %v641 = vsub.f32 %v628, %v639
    %v642 = vmul.f32 %v640, %v640
    %v643 = vmul.f32 %v641, %v641
    %v644 = vsel %vm116, %v642, 0.0
    %645 = vadd.xlane.f32.xlu0 %v644
    %v646 = vpop.xlane.xlu0 %645
    %v647 = vsel %vm116, %v643, 0.0
    %648 = vadd.xlane.f32.xlu0 %v647
    %v649 = vpop.xlane.xlu0 %648
    %v650 = vmul.f32 %v646, %v637
    %v651 = vmul.f32 %v649, %v637
    %v652 = vadd.f32 %v650, 1e-05
    %v653 = vadd.f32 %v651, 1e-05
    %v654 = vrsqrt.pop %v652
    %v655 = vrsqrt.pop %v653
    %v656 = vmul.f32 %v640, %v654
    %v657 = vmul.f32 %v641, %v655
    %v659 = vlaneseq
    %v660 = vshrl.u32 %v659, 7
    %v661 = vsub.s32 0, %v660
    %v662 = vrot.slane %v629, %v661
    %v664 = vmul.f32 %v656, %v662
    %v665 = vmul.f32 %v657, %v662
    %v667 = vlaneseq
    %v668 = vshrl.u32 %v667, 7
    %v669 = vsub.s32 0, %v668
    %v670 = vrot.slane %v630, %v669
    %v672 = vadd.f32 %v664, %v670
    %v673 = vadd.f32 %v665, %v670
    %v674 = vld [vmem:[%s7] sm:$0xff]
    %v675 = vld [vmem:[%s7 + $0x8] sm:$0xff]
    %v676 = vld [vmem:[%s7 + $0x10] sm:$0xf]
    %v677 = vld [vmem:[#allocation7] sm:$0x1]
    %v679 = vlaneseq
    %v680 = vshrl.u32 %v679, 7
    %v681 = vsub.s32 0, %v680
    %v682 = vrot.slane %v677, %v681
    %v685 = vsel %vm116, %v672, 0
    %v688 = vsel %vm116, %v673, 0
    %v691 = vsel %vm123, %v676, 0
    %693 = vmatprep.subr.mxu0 0.0
    %694 = vmatpush1.msra.mxu0 0.0
    %695 = vmatprep.subr.mxu0 0.0
    %696 = vmatpush1.msra.mxu0 0.0
    %697 = vmatprep.subr.mxu0 0.0
    %698 = vmatpush1.msra.mxu0 0.0
    %699 = vmatprep.subr.mxu0 0.0
    %700 = vmatpush1.msra.mxu0 0.0
    %701 = vmatprep.subr.mxu0 0.0
    %702 = vmatpush1.msra.mxu0 0.0
    %703 = vmatprep.subr.mxu0 0.0
    %704 = vmatpush1.msra.mxu0 0.0
    %705 = vmatprep.subr.mxu0 0.0
    %706 = vmatpush1.msra.mxu0 0.0
    %707 = vmatprep.subr.mxu0 0.0
    %708 = vmatpush1.msra.mxu0 0.0
    %709 = vmatprep.subr.mxu0 0.0
    %710 = vmatpush1.msra.mxu0 0.0
    %711 = vmatprep.subr.mxu0 0.0
    %712 = vmatpush1.msra.mxu0 0.0
    %713 = vmatprep.subr.mxu0 0.0
    %714 = vmatpush1.msra.mxu0 0.0
    %715 = vmatprep.subr.mxu0 0.0
    %716 = vmatpush1.msra.mxu0 0.0
    %717 = vmatprep.subr.mxu0 0.0
    %718 = vmatpush1.msra.mxu0 0.0
    %719 = vmatprep.subr.mxu0 0.0
    %720 = vmatpush1.msra.mxu0 %v691
    %721 = vmatprep.subr.mxu0 0.0
    %722 = vmatpush1.msra.mxu0 %v675
    %723 = vmatprep.subr.mxu0 0.0
    %724 = vmatpush1.msra.mxu0 %v674
    %725 = vmatprep.subr.mxu0 0.0
    %726 = vmatpush2.msra.mxu0 0.0
    %727 = vmatprep.subr.mxu0 0.0
    %728 = vmatpush2.msra.mxu0 0.0
    %729 = vmatprep.subr.mxu0 0.0
    %730 = vmatpush2.msra.mxu0 0.0
    %731 = vmatprep.subr.mxu0 0.0
    %732 = vmatpush2.msra.mxu0 0.0
    %733 = vmatprep.subr.mxu0 0.0
    %734 = vmatpush2.msra.mxu0 0.0
    %735 = vmatprep.subr.mxu0 0.0
    %736 = vmatpush2.msra.mxu0 0.0
    %737 = vmatprep.subr.mxu0 0.0
    %738 = vmatpush2.msra.mxu0 0.0
    %739 = vmatprep.subr.mxu0 0.0
    %740 = vmatpush2.msra.mxu0 0.0
    %741 = vmatprep.subr.mxu0 0.0
    %742 = vmatpush2.msra.mxu0 0.0
    %743 = vmatprep.subr.mxu0 0.0
    %744 = vmatpush2.msra.mxu0 0.0
    %745 = vmatprep.subr.mxu0 0.0
    %746 = vmatpush2.msra.mxu0 0.0
    %747 = vmatprep.subr.mxu0 0.0
    %748 = vmatpush2.msra.mxu0 0.0
    %749 = vmatprep.subr.mxu0 0.0
    %750 = vmatpush2.msra.mxu0 0.0
    %751 = vmatprep.subr.mxu0 0.0
    %752 = vmatpush2.msra.mxu0 0.0
    %753 = vmatprep.subr.mxu0 0.0
    %754 = vmatpush2.msra.mxu0 0.0
    %755 = vmatprep.subr.mxu0 0.0
    %756 = vmatpush2.msra.mxu0 0.0
    %757 = vmatprep.mubr.f32.mxu0 0.0
    %758 = vmatmul.mubr.f32.gmra.mxu0 %v685
    %v759 = vpop.f32.mrf.mxu0
    %v760 = vadd.f32 %v682, %v759
    %v761 = vpop.f32.mrf.mxu0
    %762 = vmatprep.mubr.f32.mxu0 0.0
    %763 = vmatmul.mubr.f32.gmra.mxu0 %v688
    %v764 = vpop.f32.mrf.mxu0
    %v765 = vadd.f32 %v682, %v764
    %v766 = vpop.f32.mrf.mxu0
    %767 = vdwg.mxu0
    %v768 = vmax.f32 %v760, 0.0
    %v769 = vmax.f32 %v765, 0.0
    %v770 = vld [vmem:[%s9] sm:$0xff]
    %v771 = vld [vmem:[%s9 + $0x8] sm:$0xff]
    %v772 = vld [vmem:[%s9 + $0x10] sm:$0xff]
    %v773 = vld [vmem:[%s9 + $0x18] sm:$0xff]
    %v774 = vld [vmem:[%s9 + $0x20] sm:$0xff]
    %v775 = vld [vmem:[%s9 + $0x28] sm:$0xff]
    %v776 = vld [vmem:[%s9 + $0x30] sm:$0xff]
    %v777 = vld [vmem:[%s9 + $0x38] sm:$0xff]
    %v778 = vld [vmem:[%s9 + $0x40] sm:$0xff]
    %v779 = vld [vmem:[#allocation8] sm:$0x1]
    %v781 = vlaneseq
    %v782 = vshrl.u32 %v781, 7
    %v783 = vsub.s32 0, %v782
    %v784 = vrot.slane %v779, %v783
    %vm786 = vcmask 588800
    %v788 = vsel %vm786, %v768, 0
    %v791 = vsel %vm786, %v769, 0
    %793 = vmatprep.subr.mxu0 0.0
    %794 = vmatpush1.msra.mxu0 0.0
    %795 = vmatprep.subr.mxu0 0.0
    %796 = vmatpush1.msra.mxu0 0.0
    %797 = vmatprep.subr.mxu0 0.0
    %798 = vmatpush1.msra.mxu0 0.0
    %799 = vmatprep.subr.mxu0 0.0
    %800 = vmatpush1.msra.mxu0 0.0
    %801 = vmatprep.subr.mxu0 0.0
    %802 = vmatpush1.msra.mxu0 0.0
    %803 = vmatprep.subr.mxu0 0.0
    %804 = vmatpush1.msra.mxu0 0.0
    %805 = vmatprep.subr.mxu0 0.0
    %806 = vmatpush1.msra.mxu0 0.0
    %807 = vmatprep.subr.mxu0 0.0
    %808 = vmatpush1.msra.mxu0 %v778
    %809 = vmatprep.subr.mxu0 0.0
    %810 = vmatpush1.msra.mxu0 %v777
    %811 = vmatprep.subr.mxu0 0.0
    %812 = vmatpush1.msra.mxu0 %v776
    %813 = vmatprep.subr.mxu0 0.0
    %814 = vmatpush1.msra.mxu0 %v775
    %815 = vmatprep.subr.mxu0 0.0
    %816 = vmatpush1.msra.mxu0 %v774
    %817 = vmatprep.subr.mxu0 0.0
    %818 = vmatpush1.msra.mxu0 %v773
    %819 = vmatprep.subr.mxu0 0.0
    %820 = vmatpush1.msra.mxu0 %v772
    %821 = vmatprep.subr.mxu0 0.0
    %822 = vmatpush1.msra.mxu0 %v771
    %823 = vmatprep.subr.mxu0 0.0
    %824 = vmatpush1.msra.mxu0 %v770
    %825 = vmatprep.subr.mxu0 0.0
    %826 = vmatpush2.msra.mxu0 0.0
    %827 = vmatprep.subr.mxu0 0.0
    %828 = vmatpush2.msra.mxu0 0.0
    %829 = vmatprep.subr.mxu0 0.0
    %830 = vmatpush2.msra.mxu0 0.0
    %831 = vmatprep.subr.mxu0 0.0
    %832 = vmatpush2.msra.mxu0 0.0
    %833 = vmatprep.subr.mxu0 0.0
    %834 = vmatpush2.msra.mxu0 0.0
    %835 = vmatprep.subr.mxu0 0.0
    %836 = vmatpush2.msra.mxu0 0.0
    %837 = vmatprep.subr.mxu0 0.0
    %838 = vmatpush2.msra.mxu0 0.0
    %839 = vmatprep.subr.mxu0 0.0
    %840 = vmatpush2.msra.mxu0 0.0
    %841 = vmatprep.subr.mxu0 0.0
    %842 = vmatpush2.msra.mxu0 0.0
    %843 = vmatprep.subr.mxu0 0.0
    %844 = vmatpush2.msra.mxu0 0.0
    %845 = vmatprep.subr.mxu0 0.0
    %846 = vmatpush2.msra.mxu0 0.0
    %847 = vmatprep.subr.mxu0 0.0
    %848 = vmatpush2.msra.mxu0 0.0
    %849 = vmatprep.subr.mxu0 0.0
    %850 = vmatpush2.msra.mxu0 0.0
    %851 = vmatprep.subr.mxu0 0.0
    %852 = vmatpush2.msra.mxu0 0.0
    %853 = vmatprep.subr.mxu0 0.0
    %854 = vmatpush2.msra.mxu0 0.0
    %855 = vmatprep.subr.mxu0 0.0
    %856 = vmatpush2.msra.mxu0 0.0
    %857 = vmatprep.mubr.f32.mxu0 0.0
    %858 = vmatmul.mubr.f32.gmra.mxu0 %v788
    %v859 = vpop.f32.mrf.mxu0
    %v860 = vadd.f32 %v784, %v859
    %v861 = vpop.f32.mrf.mxu0
    %862 = vmatprep.mubr.f32.mxu0 0.0
    %863 = vmatmul.mubr.f32.gmra.mxu0 %v791
    %v864 = vpop.f32.mrf.mxu0
    %v865 = vadd.f32 %v784, %v864
    %v866 = vpop.f32.mrf.mxu0
    %867 = vdwg.mxu0
    %v868 = vadd.f32 %v672, %v860
    %v869 = vadd.f32 %v673, %v865
    %v870 = vld [vmem:[%s11] sm:$0x1]
    %v871 = vld [vmem:[%s12] sm:$0x1]
    %v872 = vsel %vm116, %v868, 0.0
    %873 = vadd.xlane.f32.xlu0 %v872
    %v874 = vpop.xlane.xlu0 %873
    %v875 = vsel %vm116, %v869, 0.0
    %876 = vadd.xlane.f32.xlu0 %v875
    %v877 = vpop.xlane.xlu0 %876
    %v878 = vmul.f32 %v874, %v637
    %v879 = vmul.f32 %v877, %v637
    %v880 = vsub.f32 %v868, %v878
    %v881 = vsub.f32 %v869, %v879
    %v882 = vmul.f32 %v880, %v880
    %v883 = vmul.f32 %v881, %v881
    %v884 = vsel %vm116, %v882, 0.0
    %885 = vadd.xlane.f32.xlu0 %v884
    %v886 = vpop.xlane.xlu0 %885
    %v887 = vsel %vm116, %v883, 0.0
    %888 = vadd.xlane.f32.xlu0 %v887
    %v889 = vpop.xlane.xlu0 %888
    %v890 = vmul.f32 %v886, %v637
    %v891 = vmul.f32 %v889, %v637
    %v892 = vadd.f32 %v890, 1e-05
    %v893 = vadd.f32 %v891, 1e-05
    %v894 = vrsqrt.pop %v892
    %v895 = vrsqrt.pop %v893
    %v896 = vmul.f32 %v880, %v894
    %v897 = vmul.f32 %v881, %v895
    %v899 = vlaneseq
    %v900 = vshrl.u32 %v899, 7
    %v901 = vsub.s32 0, %v900
    %v902 = vrot.slane %v870, %v901
    %v904 = vmul.f32 %v896, %v902
    %v905 = vmul.f32 %v897, %v902
    %v907 = vlaneseq
    %v908 = vshrl.u32 %v907, 7
    %v909 = vsub.s32 0, %v908
    %v910 = vrot.slane %v871, %v909
    %v912 = vadd.f32 %v904, %v910
    %v913 = vadd.f32 %v905, %v910
    %v914 = vsel %vm116, %v912, 0.0
    %v915 = vrot.slane %v914, 4
    %v916 = vadd.f32 %v914, %v915
    %v917 = vrot.slane %v916, 2
    %v918 = vadd.f32 %v916, %v917
    %v919 = vrot.slane %v918, 1
    %v920 = vadd.f32 %v918, %v919
    %v921 = vsel %vm116, %v913, 0.0
    %v922 = vrot.slane %v921, 4
    %v923 = vadd.f32 %v921, %v922
    %v924 = vrot.slane %v923, 2
    %v925 = vadd.f32 %v923, %v924
    %v926 = vrot.slane %v925, 1
    %v927 = vadd.f32 %v925, %v926
    %v928 = vmul.f32 %v920, 0.125
    %v929 = vmul.f32 %v927, 0.125
    %v930 = vld [vmem:[%s13] sm:$0xff]
    %v931 = vld [vmem:[%s13 + $0x8] sm:$0xff]
    %v932 = vld [vmem:[%s13 + $0x10] sm:$0xf]
    %v933 = vld [vmem:[%s14] sm:$0x1]
    %v935 = vlaneseq
    %v936 = vshrl.u32 %v935, 7
    %v937 = vsub.s32 0, %v936
    %v938 = vrot.slane %v933, %v937
    %vm942 = vcmask 1041409
    %v943 = vsel %vm942, %v929, %v928
    %v944 = vsel %vm116, %v943, 0
    %v947 = vsel %vm123, %v932, 0
    %949 = vmatprep.subr.mxu0 0.0
    %950 = vmatpush1.msra.mxu0 0.0
    %951 = vmatprep.subr.mxu0 0.0
    %952 = vmatpush1.msra.mxu0 0.0
    %953 = vmatprep.subr.mxu0 0.0
    %954 = vmatpush1.msra.mxu0 0.0
    %955 = vmatprep.subr.mxu0 0.0
    %956 = vmatpush1.msra.mxu0 0.0
    %957 = vmatprep.subr.mxu0 0.0
    %958 = vmatpush1.msra.mxu0 0.0
    %959 = vmatprep.subr.mxu0 0.0
    %960 = vmatpush1.msra.mxu0 0.0
    %961 = vmatprep.subr.mxu0 0.0
    %962 = vmatpush1.msra.mxu0 0.0
    %963 = vmatprep.subr.mxu0 0.0
    %964 = vmatpush1.msra.mxu0 0.0
    %965 = vmatprep.subr.mxu0 0.0
    %966 = vmatpush1.msra.mxu0 0.0
    %967 = vmatprep.subr.mxu0 0.0
    %968 = vmatpush1.msra.mxu0 0.0
    %969 = vmatprep.subr.mxu0 0.0
    %970 = vmatpush1.msra.mxu0 0.0
    %971 = vmatprep.subr.mxu0 0.0
    %972 = vmatpush1.msra.mxu0 0.0
    %973 = vmatprep.subr.mxu0 0.0
    %974 = vmatpush1.msra.mxu0 0.0
    %975 = vmatprep.subr.mxu0 0.0
    %976 = vmatpush1.msra.mxu0 %v947
    %977 = vmatprep.subr.mxu0 0.0
    %978 = vmatpush1.msra.mxu0 %v931
    %979 = vmatprep.subr.mxu0 0.0
    %980 = vmatpush1.msra.mxu0 %v930
    %981 = vmatprep.subr.mxu0 0.0
    %982 = vmatpush2.msra.mxu0 0.0
    %983 = vmatprep.subr.mxu0 0.0
    %984 = vmatpush2.msra.mxu0 0.0
    %985 = vmatprep.subr.mxu0 0.0
    %986 = vmatpush2.msra.mxu0 0.0
    %987 = vmatprep.subr.mxu0 0.0
    %988 = vmatpush2.msra.mxu0 0.0
    %989 = vmatprep.subr.mxu0 0.0
    %990 = vmatpush2.msra.mxu0 0.0
    %991 = vmatprep.subr.mxu0 0.0
    %992 = vmatpush2.msra.mxu0 0.0
    %993 = vmatprep.subr.mxu0 0.0
    %994 = vmatpush2.msra.mxu0 0.0
    %995 = vmatprep.subr.mxu0 0.0
    %996 = vmatpush2.msra.mxu0 0.0
    %997 = vmatprep.subr.mxu0 0.0
    %998 = vmatpush2.msra.mxu0 0.0
    %999 = vmatprep.subr.mxu0 0.0
    %1000 = vmatpush2.msra.mxu0 0.0
    %1001 = vmatprep.subr.mxu0 0.0
    %1002 = vmatpush2.msra.mxu0 0.0
    %1003 = vmatprep.subr.mxu0 0.0
    %1004 = vmatpush2.msra.mxu0 0.0
    %1005 = vmatprep.subr.mxu0 0.0
    %1006 = vmatpush2.msra.mxu0 0.0
    %1007 = vmatprep.subr.mxu0 0.0
    %1008 = vmatpush2.msra.mxu0 0.0
    %1009 = vmatprep.subr.mxu0 0.0
    %1010 = vmatpush2.msra.mxu0 0.0
    %1011 = vmatprep.subr.mxu0 0.0
    %1012 = vmatpush2.msra.mxu0 0.0
    %1013 = vmatprep.mubr.f32.mxu0 0.0
    %1014 = vmatmul.mubr.f32.gmra.mxu0 %v944
    %v1015 = vpop.f32.mrf.mxu0
    %v1016 = vadd.f32 %v938, %v1015
    %v1017 = vpop.f32.mrf.mxu0
    %1018 = vdwg.mxu0
    %v1019 = vmax.f32 %v1016, 0.0
    %v1020 = vld [vmem:[%s15] sm:$0xff]
    %v1021 = vld [vmem:[%s15 + $0x8] sm:$0xff]
    %v1022 = vld [vmem:[%s15 + $0x10] sm:$0xf]
    %v1023 = vld [vmem:[%s16] sm:$0x1]
    %v1025 = vlaneseq
    %v1026 = vshrl.u32 %v1025, 7
    %v1027 = vsub.s32 0, %v1026
    %v1028 = vrot.slane %v1023, %v1027
    %v1031 = vsel %vm116, %v1019, 0
    %v1034 = vsel %vm123, %v1022, 0
    %1036 = vmatprep.subr.mxu0 0.0
    %1037 = vmatpush1.msra.mxu0 0.0
    %1038 = vmatprep.subr.mxu0 0.0
    %1039 = vmatpush1.msra.mxu0 0.0
    %1040 = vmatprep.subr.mxu0 0.0
    %1041 = vmatpush1.msra.mxu0 0.0
    %1042 = vmatprep.subr.mxu0 0.0
    %1043 = vmatpush1.msra.mxu0 0.0
    %1044 = vmatprep.subr.mxu0 0.0
    %1045 = vmatpush1.msra.mxu0 0.0
    %1046 = vmatprep.subr.mxu0 0.0
    %1047 = vmatpush1.msra.mxu0 0.0
    %1048 = vmatprep.subr.mxu0 0.0
    %1049 = vmatpush1.msra.mxu0 0.0
    %1050 = vmatprep.subr.mxu0 0.0
    %1051 = vmatpush1.msra.mxu0 0.0
    %1052 = vmatprep.subr.mxu0 0.0
    %1053 = vmatpush1.msra.mxu0 0.0
    %1054 = vmatprep.subr.mxu0 0.0
    %1055 = vmatpush1.msra.mxu0 0.0
    %1056 = vmatprep.subr.mxu0 0.0
    %1057 = vmatpush1.msra.mxu0 0.0
    %1058 = vmatprep.subr.mxu0 0.0
    %1059 = vmatpush1.msra.mxu0 0.0
    %1060 = vmatprep.subr.mxu0 0.0
    %1061 = vmatpush1.msra.mxu0 0.0
    %1062 = vmatprep.subr.mxu0 0.0
    %1063 = vmatpush1.msra.mxu0 %v1034
    %1064 = vmatprep.subr.mxu0 0.0
    %1065 = vmatpush1.msra.mxu0 %v1021
    %1066 = vmatprep.subr.mxu0 0.0
    %1067 = vmatpush1.msra.mxu0 %v1020
    %1068 = vmatprep.subr.mxu0 0.0
    %1069 = vmatpush2.msra.mxu0 0.0
    %1070 = vmatprep.subr.mxu0 0.0
    %1071 = vmatpush2.msra.mxu0 0.0
    %1072 = vmatprep.subr.mxu0 0.0
    %1073 = vmatpush2.msra.mxu0 0.0
    %1074 = vmatprep.subr.mxu0 0.0
    %1075 = vmatpush2.msra.mxu0 0.0
    %1076 = vmatprep.subr.mxu0 0.0
    %1077 = vmatpush2.msra.mxu0 0.0
    %1078 = vmatprep.subr.mxu0 0.0
    %1079 = vmatpush2.msra.mxu0 0.0
    %1080 = vmatprep.subr.mxu0 0.0
    %1081 = vmatpush2.msra.mxu0 0.0
    %1082 = vmatprep.subr.mxu0 0.0
    %1083 = vmatpush2.msra.mxu0 0.0
    %1084 = vmatprep.subr.mxu0 0.0
    %1085 = vmatpush2.msra.mxu0 0.0
    %1086 = vmatprep.subr.mxu0 0.0
    %1087 = vmatpush2.msra.mxu0 0.0
    %1088 = vmatprep.subr.mxu0 0.0
    %1089 = vmatpush2.msra.mxu0 0.0
    %1090 = vmatprep.subr.mxu0 0.0
    %1091 = vmatpush2.msra.mxu0 0.0
    %1092 = vmatprep.subr.mxu0 0.0
    %1093 = vmatpush2.msra.mxu0 0.0
    %1094 = vmatprep.subr.mxu0 0.0
    %1095 = vmatpush2.msra.mxu0 0.0
    %1096 = vmatprep.subr.mxu0 0.0
    %1097 = vmatpush2.msra.mxu0 0.0
    %1098 = vmatprep.subr.mxu0 0.0
    %1099 = vmatpush2.msra.mxu0 0.0
    %1100 = vmatprep.mubr.f32.mxu0 0.0
    %1101 = vmatmul.mubr.f32.gmra.mxu0 %v1031
    %v1102 = vpop.f32.mrf.mxu0
    %v1103 = vadd.f32 %v1028, %v1102
    %v1104 = vpop.f32.mrf.mxu0
    %1105 = vdwg.mxu0
    %vm1106 = vcmask 9216
    %1107 = vst.msk [vmem:[#allocation10] sm:$0x3] %vm1106, %v1103
    // Predicated region
    $region86: #{tpu_custom_call.1} parent=1 // pred_check
      _
    $region87: #{tpu_custom_call.1} parent=1 // pred_check_branch
      %1109 = sbr.rel (0) target = $region89
    $region88: #{tpu_custom_call.1} parent=1 // pred_region
      %s1111 = ssub.s32 32, 32
      %1112 = vsyncadd [#allocation4], %s1111
      %s1114 = sshll.u32 [#allocation10], 4
      %s1115 = int_to_ptr.vmem [resolvable:$true] %s1114
      %1117 = dma.vmem_to_hbm [thread:$0]  %s1115, 32, %s17, [#allocation4]
    $region89: #{tpu_custom_call.1} parent=1 // pred_fallthru
      _
    // Predicated region
    $region90: #{tpu_custom_call.1} parent=1 // pred_check
      _
    $region91: #{tpu_custom_call.1} parent=1 // pred_check_branch
      %1119 = sbr.rel (0) target = $region93
    $region92: #{tpu_custom_call.1} parent=1 // pred_region
      %1120 = dma.done [#allocation4], 32
    $region93: #{tpu_custom_call.1} parent=1 // pred_fallthru
      _
    %1121 = vsyncpa [#allocation3], 1
    %1122 = vsyncpa [#allocation6], 1
    %1123 = vsyncpa [#allocation9], 1
    %1124 = vsyncpa [#allocation4], 1

</llo_original>
